<compile_context>
chip_gen: v7x
topology: tpu7x:2x2x1
jax: 0.10.0
libtpu: 0.0.40
codegen_flags: <defaults>
</compile_context>

<pallas_src>
import jax
import jax.numpy as jnp
from jax.experimental import pallas as pl
from jax.experimental.pallas import tpu as pltpu


def _round_up(x, m):
    return (x + m - 1) // m * m


def _row_reduce(ones_row, x):
    # (1, E) . (tile_b, E)^T -> (1, tile_b): per-row reduction over E on the
    # MXU, delivered with the batch on the 128-lane axis (lane-dense output).
    return jax.lax.dot_general(
        ones_row, x,
        dimension_numbers=(((1,), (1,)), ((), ())),
        preferred_element_type=jnp.float32)


# --------------------------------------------------------------------------
# Fast path: small tables, VMEM-resident, gather = one-hot @ table on the MXU.
# --------------------------------------------------------------------------
def _mf_onehot_kernel(uidx_ref, pidx_ref, nidx_ref,
                      user_emb_ref, item_emb_ref, out_ref):
    tile_b = uidx_ref.shape[0]
    n_user, e = user_emb_ref.shape
    n_item = item_emb_ref.shape[0]
    f32 = jnp.float32

    uidx = uidx_ref[...]                         # (tile_b, 1) int32
    pidx = pidx_ref[...]
    nidx = nidx_ref[...]

    iota_u = jax.lax.broadcasted_iota(jnp.int32, (tile_b, n_user), 1)
    iota_i = jax.lax.broadcasted_iota(jnp.int32, (tile_b, n_item), 1)

    user_tab = user_emb_ref[...]                 # (n_user, E), VMEM-resident
    item_tab = item_emb_ref[...]                 # (n_item, E), VMEM-resident

    # Row gather as one-hot matmuls: no per-row DMA descriptors, no scalar loop.
    u = jnp.dot((iota_u == uidx).astype(f32), user_tab,
                preferred_element_type=f32)      # (tile_b, E)
    p = jnp.dot((iota_i == pidx).astype(f32), item_tab,
                preferred_element_type=f32)
    n = jnp.dot((iota_i == nidx).astype(f32), item_tab,
                preferred_element_type=f32)

    ones = jnp.ones((1, e), f32)
    out_ref[0:1, :] = _row_reduce(ones, u * p)                   # rui
    out_ref[1:2, :] = _row_reduce(ones, u * n)                   # ruj
    out_ref[2:3, :] = _row_reduce(ones, u * u + p * p + n * n)   # sq norms


# --------------------------------------------------------------------------
# Fallback path: large tables stay in HBM, fused per-row DMA gather.
# --------------------------------------------------------------------------
def _mf_dma_kernel(users_ref, pos_ref, neg_ref,          # scalar prefetch (SMEM)
                   user_emb_ref, item_emb_ref,           # tables in HBM (pl.ANY)
                   out_ref,                               # (3, tile_b) VMEM block
                   u_buf, p_buf, n_buf, sems):            # scratch
    tile_b, e = u_buf.shape
    base = pl.program_id(0) * tile_b

    def _start(i, carry):
        u_row = users_ref[base + i]
        p_row = pos_ref[base + i]
        n_row = neg_ref[base + i]
        pltpu.make_async_copy(user_emb_ref.at[pl.ds(u_row, 1)],
                              u_buf.at[pl.ds(i, 1)], sems.at[0]).start()
        pltpu.make_async_copy(item_emb_ref.at[pl.ds(p_row, 1)],
                              p_buf.at[pl.ds(i, 1)], sems.at[1]).start()
        pltpu.make_async_copy(item_emb_ref.at[pl.ds(n_row, 1)],
                              n_buf.at[pl.ds(i, 1)], sems.at[2]).start()
        return carry

    # Unrolled so index loads / address math / descriptor pushes co-issue.
    jax.lax.fori_loop(0, tile_b, _start, 0, unroll=8)

    # One wait per destination buffer instead of 3*tile_b per-row waits.
    # DMA semaphores count bytes; the tile_b (1, E) row copies into each
    # buffer sum to exactly one full (tile_b, E) buffer.
    pltpu.make_async_copy(u_buf, u_buf, sems.at[0]).wait()
    pltpu.make_async_copy(p_buf, p_buf, sems.at[1]).wait()
    pltpu.make_async_copy(n_buf, n_buf, sems.at[2]).wait()

    u = u_buf[...]
    p = p_buf[...]
    n = n_buf[...]
    ones = jnp.ones((1, e), jnp.float32)
    out_ref[0:1, :] = _row_reduce(ones, u * p)
    out_ref[1:2, :] = _row_reduce(ones, u * n)
    out_ref[2:3, :] = _row_reduce(ones, u * u + p * p + n * n)


# --------------------------------------------------------------------------
# Wrapper
# --------------------------------------------------------------------------
_ONEHOT_MAX_ROWS = 1024   # beyond this the one-hot gather's O(B*rows) work loses


def _vmem_capacity_bytes():
    try:
        info = pltpu.get_tpu_info()
        cap = getattr(info, "vmem_capacity_bytes", None)
        if cap:
            return int(cap)
    except Exception:
        pass
    return 64 * 1024 * 1024   # conservative (v7x per-TensorCore VMEM)


def mf_forward(user_emb, item_emb, users, pos_items, neg_items, *, tile_b=None):
    """Fused MF forward. Returns (rui [B,1], ruj [B,1], emb_loss scalar)."""
    user_emb = user_emb.astype(jnp.float32)
    item_emb = item_emb.astype(jnp.float32)
    B = users.shape[0]
    n_user, E = user_emb.shape
    n_item = item_emb.shape[0]

    if tile_b is None:
        # Lane-dense tile; pick the candidate minimizing padded-tail waste
        # (ties -> larger tile, fewer grid steps).
        tile_b = min((128, 256, 512), key=lambda t: (_round_up(B, t) - B, -t))
    b_pad = _round_up(B, tile_b)
    num_tiles = b_pad // tile_b

    def _pad_idx(idx):
        idx = idx.astype(jnp.int32)
        return jnp.pad(idx, (0, b_pad - B))     # pad with row 0 (always valid)

    users_p = _pad_idx(users)
    pos_p = _pad_idx(pos_items)
    neg_p = _pad_idx(neg_items)

    vmem_cap = _vmem_capacity_bytes()
    vmem_limit = int(min(max(32 * 2 ** 20, 0.75 * vmem_cap), 100 * 2 ** 20))

    def _tab_bytes(rows, e):
        # padded VMEM footprint of one (rows, e) f32 block
        return _round_up(rows, 8) * _round_up(e, 128) * 4

    # Fast-path footprint: double-buffered table blocks + one-hot / gathered
    # intermediates. Gate on row count and on fitting well under VMEM.
    onehot_need = (2 * (_tab_bytes(n_user, E) + _tab_bytes(n_item, E))
                   + 3 * tile_b * _round_up(max(n_user, n_item), 128) * 4
                   + 3 * tile_b * _round_up(E, 128) * 4)
    use_onehot = (max(n_user, n_item) <= _ONEHOT_MAX_ROWS
                  and onehot_need <= vmem_cap // 2)

    if use_onehot:
        idx_spec = pl.BlockSpec((tile_b, 1), lambda t: (t, 0))
        packed = pl.pallas_call(
            _mf_onehot_kernel,
            out_shape=jax.ShapeDtypeStruct((3, b_pad), jnp.float32),
            grid=(num_tiles,),
            in_specs=[
                idx_spec, idx_spec, idx_spec,
                pl.BlockSpec((n_user, E), lambda t: (0, 0)),   # whole table, VMEM
                pl.BlockSpec((n_item, E), lambda t: (0, 0)),   # whole table, VMEM
            ],
            out_specs=pl.BlockSpec((3, tile_b), lambda t: (0, t)),
            compiler_params=pltpu.CompilerParams(
                dimension_semantics=("parallel",),
                vmem_limit_bytes=vmem_limit,
            ),
        )(users_p.reshape(b_pad, 1), pos_p.reshape(b_pad, 1),
          neg_p.reshape(b_pad, 1), user_emb, item_emb)
    else:
        packed = pl.pallas_call(
            _mf_dma_kernel,
            out_shape=jax.ShapeDtypeStruct((3, b_pad), jnp.float32),
            grid_spec=pltpu.PrefetchScalarGridSpec(
                num_scalar_prefetch=3,
                grid=(num_tiles,),
                in_specs=[
                    pl.BlockSpec(memory_space=pl.ANY),   # user_emb stays in HBM
                    pl.BlockSpec(memory_space=pl.ANY),   # item_emb stays in HBM
                ],
                out_specs=pl.BlockSpec((3, tile_b),
                                       lambda t, u_idx, p_idx, n_idx: (0, t)),
                scratch_shapes=[
                    pltpu.VMEM((tile_b, E), jnp.float32),
                    pltpu.VMEM((tile_b, E), jnp.float32),
                    pltpu.VMEM((tile_b, E), jnp.float32),
                    pltpu.SemaphoreType.DMA((3,)),
                ],
            ),
            compiler_params=pltpu.CompilerParams(
                dimension_semantics=("parallel",),
                vmem_limit_bytes=vmem_limit,
            ),
        )(users_p, pos_p, neg_p, user_emb, item_emb)

    rui = packed[0, :B].reshape(B, 1)
    ruj = packed[1, :B].reshape(B, 1)
    emb_loss = jnp.sum(packed[2, :B])
    return rui, ruj, emb_loss


if __name__ == "__main__":
    # Small deterministic setup (matches nn.init.normal_(std=0.0001)).
    n_user, n_item, embedding_size = 16, 32, 4
    batch = 8
    init_std = 0.0001

    key = jax.random.PRNGKey(0)
    k_user, k_item, k_u, k_p, k_n = jax.random.split(key, 5)

    user_emb = (init_std * jax.random.normal(
        k_user, (n_user, embedding_size))).astype(jnp.float32)
    item_emb = (init_std * jax.random.normal(
        k_item, (n_item, embedding_size))).astype(jnp.float32)

    users = jax.random.randint(k_u, (batch,), 0, n_user, dtype=jnp.int32)
    pos_items = jax.random.randint(k_p, (batch,), 0, n_item, dtype=jnp.int32)
    neg_items = jax.random.randint(k_n, (batch,), 0, n_item, dtype=jnp.int32)

    rui, ruj, emb_loss = jax.jit(mf_forward)(
        user_emb, item_emb, users, pos_items, neg_items)
    jax.block_until_ready((rui, ruj, emb_loss))

    # Pure-JAX reference (mirrors the PyTorch forward).
    u_vec = user_emb[users]
    p_vec = item_emb[pos_items]
    n_vec = item_emb[neg_items]
    rui_ref = jnp.sum(u_vec * p_vec, axis=-1, keepdims=True)
    ruj_ref = jnp.sum(u_vec * n_vec, axis=-1, keepdims=True)
    loss_ref = jnp.sum(u_vec ** 2) + jnp.sum(p_vec ** 2) + jnp.sum(n_vec ** 2)

    assert rui.shape == (batch, 1) and ruj.shape == (batch, 1)
    assert jnp.allclose(rui, rui_ref, atol=1e-6)
    assert jnp.allclose(ruj, ruj_ref, atol=1e-6)
    assert jnp.allclose(emb_loss, loss_ref, atol=1e-6)

    print("KERNEL_OK")
</pallas_src>

<mosaic_0001>
module attributes {stable_mosaic.version = 11 : i64} {
  func.func @_mf_onehot_kernel(%arg0: i32, %arg1: memref<128x1xi32, #tpu.memory_space<vmem>>, %arg2: memref<128x1xi32, #tpu.memory_space<vmem>>, %arg3: memref<128x1xi32, #tpu.memory_space<vmem>>, %arg4: memref<16x4xf32, #tpu.memory_space<vmem>>, %arg5: memref<32x4xf32, #tpu.memory_space<vmem>>, %arg6: memref<3x128xf32, #tpu.memory_space<vmem>>) attributes {dimension_semantics = [#tpu.dimension_semantics<parallel>], iteration_bounds = array<i64: 1>, scalar_prefetch = 0 : i64, scratch_operands = 0 : i64, tpu.core_type = #tpu.core_type<tc>, window_params = [{transform_indices = @transform_0, window_bounds = array<i64: 128, 1>}, {transform_indices = @transform_1, window_bounds = array<i64: 128, 1>}, {transform_indices = @transform_2, window_bounds = array<i64: 128, 1>}, {pipeline_mode = #tpu.pipeline_mode<synchronous>, transform_indices = @transform_3, window_bounds = array<i64: 16, 4>}, {pipeline_mode = #tpu.pipeline_mode<synchronous>, transform_indices = @transform_4, window_bounds = array<i64: 32, 4>}, {transform_indices = @transform_5, window_bounds = array<i64: 3, 128>}]} {
    %c0 = arith.constant 0 : index
    %c0_0 = arith.constant 0 : index
    %0 = vector.load %arg1[%c0, %c0_0] : memref<128x1xi32, #tpu.memory_space<vmem>>, vector<128x1xi32>
    %c0_1 = arith.constant 0 : index
    %c0_2 = arith.constant 0 : index
    %1 = vector.load %arg2[%c0_1, %c0_2] : memref<128x1xi32, #tpu.memory_space<vmem>>, vector<128x1xi32>
    %c0_3 = arith.constant 0 : index
    %c0_4 = arith.constant 0 : index
    %2 = vector.load %arg3[%c0_3, %c0_4] : memref<128x1xi32, #tpu.memory_space<vmem>>, vector<128x1xi32>
    %3 = tpu.iota {dimensions = array<i32: 1>} : vector<128x16xi32>
    %4 = tpu.iota {dimensions = array<i32: 1>} : vector<128x32xi32>
    %c0_5 = arith.constant 0 : index
    %c0_6 = arith.constant 0 : index
    %5 = vector.load %arg4[%c0_5, %c0_6] : memref<16x4xf32, #tpu.memory_space<vmem>>, vector<16x4xf32>
    %c0_7 = arith.constant 0 : index
    %c0_8 = arith.constant 0 : index
    %6 = vector.load %arg5[%c0_7, %c0_8] : memref<32x4xf32, #tpu.memory_space<vmem>>, vector<32x4xf32>
    %7 = vector.broadcast %0 : vector<128x1xi32> to vector<128x16xi32>
    %8 = arith.cmpi eq, %3, %7 : vector<128x16xi32>
    %9 = arith.extui %8 : vector<128x16xi1> to vector<128x16xi32>
    %10 = arith.sitofp %9 : vector<128x16xi32> to vector<128x16xf32>
    %cst = arith.constant dense<0.000000e+00> : vector<128x4xf32>
    %11 = tpu.matmul %10, %5, %cst {dimension_numbers = #tpu.dot_dimension_numbers<[1], [0], [0], [1], [0, 0, 1, 1], [], []>} : vector<128x16xf32>, vector<16x4xf32>, vector<128x4xf32> -> vector<128x4xf32>
    %12 = vector.broadcast %1 : vector<128x1xi32> to vector<128x32xi32>
    %13 = arith.cmpi eq, %4, %12 : vector<128x32xi32>
    %14 = arith.extui %13 : vector<128x32xi1> to vector<128x32xi32>
    %15 = arith.sitofp %14 : vector<128x32xi32> to vector<128x32xf32>
    %cst_9 = arith.constant dense<0.000000e+00> : vector<128x4xf32>
    %16 = tpu.matmul %15, %6, %cst_9 {dimension_numbers = #tpu.dot_dimension_numbers<[1], [0], [0], [1], [0, 0, 1, 1], [], []>} : vector<128x32xf32>, vector<32x4xf32>, vector<128x4xf32> -> vector<128x4xf32>
    %17 = vector.broadcast %2 : vector<128x1xi32> to vector<128x32xi32>
    %18 = arith.cmpi eq, %4, %17 : vector<128x32xi32>
    %19 = arith.extui %18 : vector<128x32xi1> to vector<128x32xi32>
    %20 = arith.sitofp %19 : vector<128x32xi32> to vector<128x32xf32>
    %cst_10 = arith.constant dense<0.000000e+00> : vector<128x4xf32>
    %21 = tpu.matmul %20, %6, %cst_10 {dimension_numbers = #tpu.dot_dimension_numbers<[1], [0], [0], [1], [0, 0, 1, 1], [], []>} : vector<128x32xf32>, vector<32x4xf32>, vector<128x4xf32> -> vector<128x4xf32>
    %cst_11 = arith.constant 1.000000e+00 : f32
    %22 = vector.broadcast %cst_11 : f32 to vector<1x4xf32>
    %23 = arith.mulf %11, %16 : vector<128x4xf32>
    %cst_12 = arith.constant dense<0.000000e+00> : vector<1x128xf32>
    %24 = tpu.matmul %22, %23, %cst_12 {dimension_numbers = #tpu.dot_dimension_numbers<[1], [1], [0], [0], [0, 0, 1, 0], [], []>} : vector<1x4xf32>, vector<128x4xf32>, vector<1x128xf32> -> vector<1x128xf32>
    %c0_13 = arith.constant 0 : index
    %c0_14 = arith.constant 0 : index
    %25 = vector.load %arg6[%c0_13, %c0_14] : memref<3x128xf32, #tpu.memory_space<vmem>>, vector<1x128xf32>
    tpu.vector_store %arg6[%c0_13, %c0_14], %24 {strides = array<i32>} : memref<3x128xf32, #tpu.memory_space<vmem>>, vector<1x128xf32>,
    %26 = arith.mulf %11, %21 : vector<128x4xf32>
    %cst_15 = arith.constant dense<0.000000e+00> : vector<1x128xf32>
    %27 = tpu.matmul %22, %26, %cst_15 {dimension_numbers = #tpu.dot_dimension_numbers<[1], [1], [0], [0], [0, 0, 1, 0], [], []>} : vector<1x4xf32>, vector<128x4xf32>, vector<1x128xf32> -> vector<1x128xf32>
    %c1 = arith.constant 1 : index
    %c0_16 = arith.constant 0 : index
    %28 = vector.load %arg6[%c1, %c0_16] : memref<3x128xf32, #tpu.memory_space<vmem>>, vector<1x128xf32>
    tpu.vector_store %arg6[%c1, %c0_16], %27 {strides = array<i32>} : memref<3x128xf32, #tpu.memory_space<vmem>>, vector<1x128xf32>,
    %29 = arith.mulf %11, %11 : vector<128x4xf32>
    %30 = arith.mulf %16, %16 : vector<128x4xf32>
    %31 = arith.addf %29, %30 : vector<128x4xf32>
    %32 = arith.mulf %21, %21 : vector<128x4xf32>
    %33 = arith.addf %31, %32 : vector<128x4xf32>
    %cst_17 = arith.constant dense<0.000000e+00> : vector<1x128xf32>
    %34 = tpu.matmul %22, %33, %cst_17 {dimension_numbers = #tpu.dot_dimension_numbers<[1], [1], [0], [0], [0, 0, 1, 0], [], []>} : vector<1x4xf32>, vector<128x4xf32>, vector<1x128xf32> -> vector<1x128xf32>
    %c2 = arith.constant 2 : index
    %c0_18 = arith.constant 0 : index
    %35 = vector.load %arg6[%c2, %c0_18] : memref<3x128xf32, #tpu.memory_space<vmem>>, vector<1x128xf32>
    tpu.vector_store %arg6[%c2, %c0_18], %34 {strides = array<i32>} : memref<3x128xf32, #tpu.memory_space<vmem>>, vector<1x128xf32>,
    return
  }
  func.func @transform_0(%arg0: i32) -> (i32, i32) {
    %c0_i32 = arith.constant 0 : i32
    %c0_i32_0 = arith.constant 0 : i32
    return %arg0, %c0_i32 : i32, i32
  }
  func.func @transform_1(%arg0: i32) -> (i32, i32) {
    %c0_i32 = arith.constant 0 : i32
    %c0_i32_0 = arith.constant 0 : i32
    return %arg0, %c0_i32 : i32, i32
  }
  func.func @transform_2(%arg0: i32) -> (i32, i32) {
    %c0_i32 = arith.constant 0 : i32
    %c0_i32_0 = arith.constant 0 : i32
    return %arg0, %c0_i32 : i32, i32
  }
  func.func @transform_3(%arg0: i32) -> (i32, i32) {
    %c0_i32 = arith.constant 0 : i32
    %c0_i32_0 = arith.constant 0 : i32
    %c0_i32_1 = arith.constant 0 : i32
    return %c0_i32, %c0_i32_0 : i32, i32
  }
  func.func @transform_4(%arg0: i32) -> (i32, i32) {
    %c0_i32 = arith.constant 0 : i32
    %c0_i32_0 = arith.constant 0 : i32
    %c0_i32_1 = arith.constant 0 : i32
    return %c0_i32, %c0_i32_0 : i32, i32
  }
  func.func @transform_5(%arg0: i32) -> (i32, i32) {
    %c0_i32 = arith.constant 0 : i32
    %c0_i32_0 = arith.constant 0 : i32
    return %c0_i32, %arg0 : i32, i32
  }
}

</mosaic_0001>

<llo_original>
// kernel: mf_forward.1
$region0: #{mf_forward.1}
  #allocation0 [shape = 'u32[]', space=smem, size = 0x4, offset = 0x4, fixed_abs, tag = 'smem constant byte address 0x4 - core index']
  #allocation1 [shape = 'u32[144,128]{1,0:T(1,128)}', space=vmem, size = 0x12000, scoped, tag = 'internal scratch']
  %s0 = inlined_call_operand.vmem [shape: s32[128,1], index: 0, kind: input, shape index: {}]
  %s1 = inlined_call_operand.vmem [shape: s32[128,1], index: 1, kind: input, shape index: {}]
  %s2 = inlined_call_operand.vmem [shape: s32[128,1], index: 2, kind: input, shape index: {}]
  %s3 = inlined_call_operand.vmem [shape: f32[16,4], index: 3, kind: input, shape index: {}]
  %s4 = inlined_call_operand.vmem [shape: f32[32,4], index: 4, kind: input, shape index: {}]
  %s5 = inlined_call_operand.vmem [shape: f32[3,128], index: 5, kind: output, shape index: {}]
  %s6 = sld [smem:[#allocation0]]
  $region30: #{mf_forward.1} parent=0
    _
  %s8 = ssub.s32 1, %s6
  %s9 = scalar_select 0, %s8, %s6
  // Predicated region
  $region2: #{mf_forward.1} parent=0 // pred_check
    _
  $region3: #{mf_forward.1} parent=0 // pred_check_branch
    %11 = sbr.rel (0) target = $region5
  $region4: #{mf_forward.1} parent=0 // pred_region
    _
  $region5: #{mf_forward.1} parent=0 // pred_fallthru
    _
  // Predicated region
  $region6: #{mf_forward.1} parent=0 // pred_check
    _
  $region7: #{mf_forward.1} parent=0 // pred_check_branch
    %13 = sbr.rel (0) target = $region9
  $region8: #{mf_forward.1} parent=0 // pred_region
    _
  $region9: #{mf_forward.1} parent=0 // pred_fallthru
    _
  // Predicated region
  $region10: #{mf_forward.1} parent=0 // pred_check
    _
  $region11: #{mf_forward.1} parent=0 // pred_check_branch
    %15 = sbr.rel (0) target = $region13
  $region12: #{mf_forward.1} parent=0 // pred_region
    _
  $region13: #{mf_forward.1} parent=0 // pred_fallthru
    _
  // Predicated region
  $region14: #{mf_forward.1} parent=0 // pred_check
    _
  $region15: #{mf_forward.1} parent=0 // pred_check_branch
    %17 = sbr.rel (0) target = $region17
  $region16: #{mf_forward.1} parent=0 // pred_region
    _
  $region17: #{mf_forward.1} parent=0 // pred_fallthru
    _
  // Predicated region
  $region18: #{mf_forward.1} parent=0 // pred_check
    _
  $region19: #{mf_forward.1} parent=0 // pred_check_branch
    %19 = sbr.rel (0) target = $region21
  $region20: #{mf_forward.1} parent=0 // pred_region
    _
  $region21: #{mf_forward.1} parent=0 // pred_fallthru
    _
  %v20 = vld [vmem:[%s0] sm:$0xff]
  %v21 = vld [vmem:[%s0 + $0x8] sm:$0xff]
  %v22 = vld [vmem:[%s0 + $0x10] sm:$0xff]
  %v23 = vld [vmem:[%s0 + $0x18] sm:$0xff]
  %v24 = vld [vmem:[%s0 + $0x20] sm:$0xff]
  %v25 = vld [vmem:[%s0 + $0x28] sm:$0xff]
  %v26 = vld [vmem:[%s0 + $0x30] sm:$0xff]
  %v27 = vld [vmem:[%s0 + $0x38] sm:$0xff]
  %v28 = vld [vmem:[%s0 + $0x40] sm:$0xff]
  %v29 = vld [vmem:[%s0 + $0x48] sm:$0xff]
  %v30 = vld [vmem:[%s0 + $0x50] sm:$0xff]
  %v31 = vld [vmem:[%s0 + $0x58] sm:$0xff]
  %v32 = vld [vmem:[%s0 + $0x60] sm:$0xff]
  %v33 = vld [vmem:[%s0 + $0x68] sm:$0xff]
  %v34 = vld [vmem:[%s0 + $0x70] sm:$0xff]
  %v35 = vld [vmem:[%s0 + $0x78] sm:$0xff]
  %v36 = vld [vmem:[%s1] sm:$0xff]
  %v37 = vld [vmem:[%s1 + $0x8] sm:$0xff]
  %v38 = vld [vmem:[%s1 + $0x10] sm:$0xff]
  %v39 = vld [vmem:[%s1 + $0x18] sm:$0xff]
  %v40 = vld [vmem:[%s1 + $0x20] sm:$0xff]
  %v41 = vld [vmem:[%s1 + $0x28] sm:$0xff]
  %v42 = vld [vmem:[%s1 + $0x30] sm:$0xff]
  %v43 = vld [vmem:[%s1 + $0x38] sm:$0xff]
  %v44 = vld [vmem:[%s1 + $0x40] sm:$0xff]
  %v45 = vld [vmem:[%s1 + $0x48] sm:$0xff]
  %v46 = vld [vmem:[%s1 + $0x50] sm:$0xff]
  %v47 = vld [vmem:[%s1 + $0x58] sm:$0xff]
  %v48 = vld [vmem:[%s1 + $0x60] sm:$0xff]
  %v49 = vld [vmem:[%s1 + $0x68] sm:$0xff]
  %v50 = vld [vmem:[%s1 + $0x70] sm:$0xff]
  %v51 = vld [vmem:[%s1 + $0x78] sm:$0xff]
  %v52 = vld [vmem:[%s2] sm:$0xff]
  %v53 = vld [vmem:[%s2 + $0x8] sm:$0xff]
  %v54 = vld [vmem:[%s2 + $0x10] sm:$0xff]
  %v55 = vld [vmem:[%s2 + $0x18] sm:$0xff]
  %v56 = vld [vmem:[%s2 + $0x20] sm:$0xff]
  %v57 = vld [vmem:[%s2 + $0x28] sm:$0xff]
  %v58 = vld [vmem:[%s2 + $0x30] sm:$0xff]
  %v59 = vld [vmem:[%s2 + $0x38] sm:$0xff]
  %v60 = vld [vmem:[%s2 + $0x40] sm:$0xff]
  %v61 = vld [vmem:[%s2 + $0x48] sm:$0xff]
  %v62 = vld [vmem:[%s2 + $0x50] sm:$0xff]
  %v63 = vld [vmem:[%s2 + $0x58] sm:$0xff]
  %v64 = vld [vmem:[%s2 + $0x60] sm:$0xff]
  %v65 = vld [vmem:[%s2 + $0x68] sm:$0xff]
  %v66 = vld [vmem:[%s2 + $0x70] sm:$0xff]
  %v67 = vld [vmem:[%s2 + $0x78] sm:$0xff]
  %v68 = vlaneseq
  %v69 = vand.u32 %v68, 127
  %v70 = vld [vmem:[%s3] sm:$0xff]
  %v71 = vld [vmem:[%s3 + $0x8] sm:$0xff]
  %v72 = vld [vmem:[%s4] sm:$0xff]
  %v73 = vld [vmem:[%s4 + $0x8] sm:$0xff]
  %v74 = vld [vmem:[%s4 + $0x10] sm:$0xff]
  %v75 = vld [vmem:[%s4 + $0x18] sm:$0xff]
  %76 = vset.pattern.permute.xlu0 0
  %77 = vperm.xlu0 %76, %v20
  %v78 = vpop.permute.xlu0 %77
  %79 = vset.pattern.permute.xlu0 0
  %80 = vperm.xlu0 %79, %v21
  %v81 = vpop.permute.xlu0 %80
  %82 = vset.pattern.permute.xlu0 0
  %83 = vperm.xlu0 %82, %v22
  %v84 = vpop.permute.xlu0 %83
  %85 = vset.pattern.permute.xlu0 0
  %86 = vperm.xlu0 %85, %v23
  %v87 = vpop.permute.xlu0 %86
  %88 = vset.pattern.permute.xlu0 0
  %89 = vperm.xlu0 %88, %v24
  %v90 = vpop.permute.xlu0 %89
  %91 = vset.pattern.permute.xlu0 0
  %92 = vperm.xlu0 %91, %v25
  %v93 = vpop.permute.xlu0 %92
  %94 = vset.pattern.permute.xlu0 0
  %95 = vperm.xlu0 %94, %v26
  %v96 = vpop.permute.xlu0 %95
  %97 = vset.pattern.permute.xlu0 0
  %98 = vperm.xlu0 %97, %v27
  %v99 = vpop.permute.xlu0 %98
  %100 = vset.pattern.permute.xlu0 0
  %101 = vperm.xlu0 %100, %v28
  %v102 = vpop.permute.xlu0 %101
  %103 = vset.pattern.permute.xlu0 0
  %104 = vperm.xlu0 %103, %v29
  %v105 = vpop.permute.xlu0 %104
  %106 = vset.pattern.permute.xlu0 0
  %107 = vperm.xlu0 %106, %v30
  %v108 = vpop.permute.xlu0 %107
  %109 = vset.pattern.permute.xlu0 0
  %110 = vperm.xlu0 %109, %v31
  %v111 = vpop.permute.xlu0 %110
  %112 = vset.pattern.permute.xlu0 0
  %113 = vperm.xlu0 %112, %v32
  %v114 = vpop.permute.xlu0 %113
  %115 = vset.pattern.permute.xlu0 0
  %116 = vperm.xlu0 %115, %v33
  %v117 = vpop.permute.xlu0 %116
  %118 = vset.pattern.permute.xlu0 0
  %119 = vperm.xlu0 %118, %v34
  %v120 = vpop.permute.xlu0 %119
  %121 = vset.pattern.permute.xlu0 0
  %122 = vperm.xlu0 %121, %v35
  %v123 = vpop.permute.xlu0 %122
  %vm124 = vcmp.eq.s32.totalorder %v69, %v78
  %vm125 = vcmp.eq.s32.totalorder %v69, %v81
  %vm126 = vcmp.eq.s32.totalorder %v69, %v84
  %vm127 = vcmp.eq.s32.totalorder %v69, %v87
  %vm128 = vcmp.eq.s32.totalorder %v69, %v90
  %vm129 = vcmp.eq.s32.totalorder %v69, %v93
  %vm130 = vcmp.eq.s32.totalorder %v69, %v96
  %vm131 = vcmp.eq.s32.totalorder %v69, %v99
  %vm132 = vcmp.eq.s32.totalorder %v69, %v102
  %vm133 = vcmp.eq.s32.totalorder %v69, %v105
  %vm134 = vcmp.eq.s32.totalorder %v69, %v108
  %vm135 = vcmp.eq.s32.totalorder %v69, %v111
  %vm136 = vcmp.eq.s32.totalorder %v69, %v114
  %vm137 = vcmp.eq.s32.totalorder %v69, %v117
  %vm138 = vcmp.eq.s32.totalorder %v69, %v120
  %vm139 = vcmp.eq.s32.totalorder %v69, %v123
  %v140 = vsel %vm124, 1, 0
  %v141 = vsel %vm125, 1, 0
  %v142 = vsel %vm126, 1, 0
  %v143 = vsel %vm127, 1, 0
  %v144 = vsel %vm128, 1, 0
  %v145 = vsel %vm129, 1, 0
  %v146 = vsel %vm130, 1, 0
  %v147 = vsel %vm131, 1, 0
  %v148 = vsel %vm132, 1, 0
  %v149 = vsel %vm133, 1, 0
  %v150 = vsel %vm134, 1, 0
  %v151 = vsel %vm135, 1, 0
  %v152 = vsel %vm136, 1, 0
  %v153 = vsel %vm137, 1, 0
  %v154 = vsel %vm138, 1, 0
  %v155 = vsel %vm139, 1, 0
  %v156 = vcvt.s32.f32 %v140
  %v157 = vcvt.s32.f32 %v141
  %v158 = vcvt.s32.f32 %v142
  %v159 = vcvt.s32.f32 %v143
  %v160 = vcvt.s32.f32 %v144
  %v161 = vcvt.s32.f32 %v145
  %v162 = vcvt.s32.f32 %v146
  %v163 = vcvt.s32.f32 %v147
  %v164 = vcvt.s32.f32 %v148
  %v165 = vcvt.s32.f32 %v149
  %v166 = vcvt.s32.f32 %v150
  %v167 = vcvt.s32.f32 %v151
  %v168 = vcvt.s32.f32 %v152
  %v169 = vcvt.s32.f32 %v153
  %v170 = vcvt.s32.f32 %v154
  %v171 = vcvt.s32.f32 %v155
  %vm172 = vcmask 130048
  %v174 = vsel %vm172, %v156, 0
  %v177 = vsel %vm172, %v157, 0
  %v180 = vsel %vm172, %v158, 0
  %v183 = vsel %vm172, %v159, 0
  %v186 = vsel %vm172, %v160, 0
  %v189 = vsel %vm172, %v161, 0
  %v192 = vsel %vm172, %v162, 0
  %v195 = vsel %vm172, %v163, 0
  %v198 = vsel %vm172, %v164, 0
  %v201 = vsel %vm172, %v165, 0
  %v204 = vsel %vm172, %v166, 0
  %v207 = vsel %vm172, %v167, 0
  %v210 = vsel %vm172, %v168, 0
  %v213 = vsel %vm172, %v169, 0
  %v216 = vsel %vm172, %v170, 0
  %v219 = vsel %vm172, %v171, 0
  %221 = vmatprep.subr.mxu0 0.0
  %222 = vmatpush1.msra.mxu0 %v70
  %223 = vmatprep.subr.mxu0 0.0
  %224 = vmatpush1.msra.mxu0 %v71
  %225 = vmatprep.subr.mxu0 0.0
  %226 = vmatpush1.msra.mxu0 0.0
  %227 = vmatprep.subr.mxu0 0.0
  %228 = vmatpush1.msra.mxu0 0.0
  %229 = vmatprep.subr.mxu0 0.0
  %230 = vmatpush1.msra.mxu0 0.0
  %231 = vmatprep.subr.mxu0 0.0
  %232 = vmatpush1.msra.mxu0 0.0
  %233 = vmatprep.subr.mxu0 0.0
  %234 = vmatpush1.msra.mxu0 0.0
  %235 = vmatprep.subr.mxu0 0.0
  %236 = vmatpush1.msra.mxu0 0.0
  %237 = vmatprep.subr.mxu0 0.0
  %238 = vmatpush1.msra.mxu0 0.0
  %239 = vmatprep.subr.mxu0 0.0
  %240 = vmatpush1.msra.mxu0 0.0
  %241 = vmatprep.subr.mxu0 0.0
  %242 = vmatpush1.msra.mxu0 0.0
  %243 = vmatprep.subr.mxu0 0.0
  %244 = vmatpush1.msra.mxu0 0.0
  %245 = vmatprep.subr.mxu0 0.0
  %246 = vmatpush1.msra.mxu0 0.0
  %247 = vmatprep.subr.mxu0 0.0
  %248 = vmatpush1.msra.mxu0 0.0
  %249 = vmatprep.subr.mxu0 0.0
  %250 = vmatpush1.msra.mxu0 0.0
  %251 = vmatprep.subr.mxu0 0.0
  %252 = vmatpush1.msra.mxu0 0.0
  %253 = vmatprep.subr.mxu0 0.0
  %254 = vmatpush1.msra.mxu0 0.0
  %255 = vmatprep.subr.mxu0 0.0
  %256 = vmatpush1.msra.mxu0 0.0
  %257 = vmatprep.subr.mxu0 0.0
  %258 = vmatpush1.msra.mxu0 0.0
  %259 = vmatprep.subr.mxu0 0.0
  %260 = vmatpush1.msra.mxu0 0.0
  %261 = vmatprep.subr.mxu0 0.0
  %262 = vmatpush1.msra.mxu0 0.0
  %263 = vmatprep.subr.mxu0 0.0
  %264 = vmatpush1.msra.mxu0 0.0
  %265 = vmatprep.subr.mxu0 0.0
  %266 = vmatpush1.msra.mxu0 0.0
  %267 = vmatprep.subr.mxu0 0.0
  %268 = vmatpush1.msra.mxu0 0.0
  %269 = vmatprep.subr.mxu0 0.0
  %270 = vmatpush1.msra.mxu0 0.0
  %271 = vmatprep.subr.mxu0 0.0
  %272 = vmatpush1.msra.mxu0 0.0
  %273 = vmatprep.subr.mxu0 0.0
  %274 = vmatpush1.msra.mxu0 0.0
  %275 = vmatprep.subr.mxu0 0.0
  %276 = vmatpush1.msra.mxu0 0.0
  %277 = vmatprep.subr.mxu0 0.0
  %278 = vmatpush1.msra.mxu0 0.0
  %279 = vmatprep.subr.mxu0 0.0
  %280 = vmatpush1.msra.mxu0 0.0
  %281 = vmatprep.subr.mxu0 0.0
  %282 = vmatpush1.msra.mxu0 0.0
  %283 = vmatprep.subr.mxu0 0.0
  %284 = vmatpush1.msra.mxu0 0.0
  %285 = vmatprep.mubr.f32.mxu0 0.0
  %286 = vmatmul.mubr.f32.gmra.mrb[0].mxu0 %v174
  %v287 = vpop.f32.mrb[0].mxu0
  %v288 = vadd.f32 0.0, %v287
  %v289 = vpop.f32.mrb[0].mxu0
  %290 = vmatprep.mubr.f32.mxu0 0.0
  %291 = vmatmul.mubr.f32.gmra.mrb[0].mxu0 %v177
  %v292 = vpop.f32.mrb[0].mxu0
  %v293 = vadd.f32 0.0, %v292
  %v294 = vpop.f32.mrb[0].mxu0
  %295 = vmatprep.mubr.f32.mxu0 0.0
  %296 = vmatmul.mubr.f32.gmra.mrb[0].mxu0 %v180
  %v297 = vpop.f32.mrb[0].mxu0
  %v298 = vadd.f32 0.0, %v297
  %v299 = vpop.f32.mrb[0].mxu0
  %300 = vmatprep.mubr.f32.mxu0 0.0
  %301 = vmatmul.mubr.f32.gmra.mrb[0].mxu0 %v183
  %v302 = vpop.f32.mrb[0].mxu0
  %v303 = vadd.f32 0.0, %v302
  %v304 = vpop.f32.mrb[0].mxu0
  %305 = vmatprep.mubr.f32.mxu0 0.0
  %306 = vmatmul.mubr.f32.gmra.mrb[0].mxu0 %v186
  %v307 = vpop.f32.mrb[0].mxu0
  %v308 = vadd.f32 0.0, %v307
  %v309 = vpop.f32.mrb[0].mxu0
  %310 = vmatprep.mubr.f32.mxu0 0.0
  %311 = vmatmul.mubr.f32.gmra.mrb[0].mxu0 %v189
  %v312 = vpop.f32.mrb[0].mxu0
  %v313 = vadd.f32 0.0, %v312
  %v314 = vpop.f32.mrb[0].mxu0
  %315 = vmatprep.mubr.f32.mxu0 0.0
  %316 = vmatmul.mubr.f32.gmra.mrb[0].mxu0 %v192
  %v317 = vpop.f32.mrb[0].mxu0
  %v318 = vadd.f32 0.0, %v317
  %v319 = vpop.f32.mrb[0].mxu0
  %320 = vmatprep.mubr.f32.mxu0 0.0
  %321 = vmatmul.mubr.f32.gmra.mrb[0].mxu0 %v195
  %v322 = vpop.f32.mrb[0].mxu0
  %v323 = vadd.f32 0.0, %v322
  %v324 = vpop.f32.mrb[0].mxu0
  %325 = vmatprep.mubr.f32.mxu0 0.0
  %326 = vmatmul.mubr.f32.gmra.mrb[0].mxu0 %v198
  %v327 = vpop.f32.mrb[0].mxu0
  %v328 = vadd.f32 0.0, %v327
  %v329 = vpop.f32.mrb[0].mxu0
  %330 = vmatprep.mubr.f32.mxu0 0.0
  %331 = vmatmul.mubr.f32.gmra.mrb[0].mxu0 %v201
  %v332 = vpop.f32.mrb[0].mxu0
  %v333 = vadd.f32 0.0, %v332
  %v334 = vpop.f32.mrb[0].mxu0
  %335 = vmatprep.mubr.f32.mxu0 0.0
  %336 = vmatmul.mubr.f32.gmra.mrb[0].mxu0 %v204
  %v337 = vpop.f32.mrb[0].mxu0
  %v338 = vadd.f32 0.0, %v337
  %v339 = vpop.f32.mrb[0].mxu0
  %340 = vmatprep.mubr.f32.mxu0 0.0
  %341 = vmatmul.mubr.f32.gmra.mrb[0].mxu0 %v207
  %v342 = vpop.f32.mrb[0].mxu0
  %v343 = vadd.f32 0.0, %v342
  %v344 = vpop.f32.mrb[0].mxu0
  %345 = vmatprep.mubr.f32.mxu0 0.0
  %346 = vmatmul.mubr.f32.gmra.mrb[0].mxu0 %v210
  %v347 = vpop.f32.mrb[0].mxu0
  %v348 = vadd.f32 0.0, %v347
  %v349 = vpop.f32.mrb[0].mxu0
  %350 = vmatprep.mubr.f32.mxu0 0.0
  %351 = vmatmul.mubr.f32.gmra.mrb[0].mxu0 %v213
  %v352 = vpop.f32.mrb[0].mxu0
  %v353 = vadd.f32 0.0, %v352
  %v354 = vpop.f32.mrb[0].mxu0
  %355 = vmatprep.mubr.f32.mxu0 0.0
  %356 = vmatmul.mubr.f32.gmra.mrb[0].mxu0 %v216
  %v357 = vpop.f32.mrb[0].mxu0
  %v358 = vadd.f32 0.0, %v357
  %v359 = vpop.f32.mrb[0].mxu0
  %360 = vmatprep.mubr.f32.mxu0 0.0
  %361 = vmatmul.mubr.f32.gmra.mrb[0].mxu0 %v219
  %v362 = vpop.f32.mrb[0].mxu0
  %v363 = vadd.f32 0.0, %v362
  %v364 = vpop.f32.mrb[0].mxu0
  %365 = vdwg.mxu0
  %366 = vset.pattern.permute.xlu0 0
  %367 = vperm.xlu0 %366, %v36
  %v368 = vpop.permute.xlu0 %367
  %369 = vset.pattern.permute.xlu0 0
  %370 = vperm.xlu0 %369, %v37
  %v371 = vpop.permute.xlu0 %370
  %372 = vset.pattern.permute.xlu0 0
  %373 = vperm.xlu0 %372, %v38
  %v374 = vpop.permute.xlu0 %373
  %375 = vset.pattern.permute.xlu0 0
  %376 = vperm.xlu0 %375, %v39
  %v377 = vpop.permute.xlu0 %376
  %378 = vset.pattern.permute.xlu0 0
  %379 = vperm.xlu0 %378, %v40
  %v380 = vpop.permute.xlu0 %379
  %381 = vset.pattern.permute.xlu0 0
  %382 = vperm.xlu0 %381, %v41
  %v383 = vpop.permute.xlu0 %382
  %384 = vset.pattern.permute.xlu0 0
  %385 = vperm.xlu0 %384, %v42
  %v386 = vpop.permute.xlu0 %385
  %387 = vset.pattern.permute.xlu0 0
  %388 = vperm.xlu0 %387, %v43
  %v389 = vpop.permute.xlu0 %388
  %390 = vset.pattern.permute.xlu0 0
  %391 = vperm.xlu0 %390, %v44
  %v392 = vpop.permute.xlu0 %391
  %393 = vset.pattern.permute.xlu0 0
  %394 = vperm.xlu0 %393, %v45
  %v395 = vpop.permute.xlu0 %394
  %396 = vset.pattern.permute.xlu0 0
  %397 = vperm.xlu0 %396, %v46
  %v398 = vpop.permute.xlu0 %397
  %399 = vset.pattern.permute.xlu0 0
  %400 = vperm.xlu0 %399, %v47
  %v401 = vpop.permute.xlu0 %400
  %402 = vset.pattern.permute.xlu0 0
  %403 = vperm.xlu0 %402, %v48
  %v404 = vpop.permute.xlu0 %403
  %405 = vset.pattern.permute.xlu0 0
  %406 = vperm.xlu0 %405, %v49
  %v407 = vpop.permute.xlu0 %406
  %408 = vset.pattern.permute.xlu0 0
  %409 = vperm.xlu0 %408, %v50
  %v410 = vpop.permute.xlu0 %409
  %411 = vset.pattern.permute.xlu0 0
  %412 = vperm.xlu0 %411, %v51
  %v413 = vpop.permute.xlu0 %412
  %vm414 = vcmp.eq.s32.totalorder %v69, %v368
  %vm415 = vcmp.eq.s32.totalorder %v69, %v371
  %vm416 = vcmp.eq.s32.totalorder %v69, %v374
  %vm417 = vcmp.eq.s32.totalorder %v69, %v377
  %vm418 = vcmp.eq.s32.totalorder %v69, %v380
  %vm419 = vcmp.eq.s32.totalorder %v69, %v383
  %vm420 = vcmp.eq.s32.totalorder %v69, %v386
  %vm421 = vcmp.eq.s32.totalorder %v69, %v389
  %vm422 = vcmp.eq.s32.totalorder %v69, %v392
  %vm423 = vcmp.eq.s32.totalorder %v69, %v395
  %vm424 = vcmp.eq.s32.totalorder %v69, %v398
  %vm425 = vcmp.eq.s32.totalorder %v69, %v401
  %vm426 = vcmp.eq.s32.totalorder %v69, %v404
  %vm427 = vcmp.eq.s32.totalorder %v69, %v407
  %vm428 = vcmp.eq.s32.totalorder %v69, %v410
  %vm429 = vcmp.eq.s32.totalorder %v69, %v413
  %v430 = vsel %vm414, 1, 0
  %v431 = vsel %vm415, 1, 0
  %v432 = vsel %vm416, 1, 0
  %v433 = vsel %vm417, 1, 0
  %v434 = vsel %vm418, 1, 0
  %v435 = vsel %vm419, 1, 0
  %v436 = vsel %vm420, 1, 0
  %v437 = vsel %vm421, 1, 0
  %v438 = vsel %vm422, 1, 0
  %v439 = vsel %vm423, 1, 0
  %v440 = vsel %vm424, 1, 0
  %v441 = vsel %vm425, 1, 0
  %v442 = vsel %vm426, 1, 0
  %v443 = vsel %vm427, 1, 0
  %v444 = vsel %vm428, 1, 0
  %v445 = vsel %vm429, 1, 0
  %v446 = vcvt.s32.f32 %v430
  %v447 = vcvt.s32.f32 %v431
  %v448 = vcvt.s32.f32 %v432
  %v449 = vcvt.s32.f32 %v433
  %v450 = vcvt.s32.f32 %v434
  %v451 = vcvt.s32.f32 %v435
  %v452 = vcvt.s32.f32 %v436
  %v453 = vcvt.s32.f32 %v437
  %v454 = vcvt.s32.f32 %v438
  %v455 = vcvt.s32.f32 %v439
  %v456 = vcvt.s32.f32 %v440
  %v457 = vcvt.s32.f32 %v441
  %v458 = vcvt.s32.f32 %v442
  %v459 = vcvt.s32.f32 %v443
  %v460 = vcvt.s32.f32 %v444
  %v461 = vcvt.s32.f32 %v445
  %vm462 = vcmask 261120
  %v464 = vsel %vm462, %v446, 0
  %v467 = vsel %vm462, %v447, 0
  %v470 = vsel %vm462, %v448, 0
  %v473 = vsel %vm462, %v449, 0
  %v476 = vsel %vm462, %v450, 0
  %v479 = vsel %vm462, %v451, 0
  %v482 = vsel %vm462, %v452, 0
  %v485 = vsel %vm462, %v453, 0
  %v488 = vsel %vm462, %v454, 0
  %v491 = vsel %vm462, %v455, 0
  %v494 = vsel %vm462, %v456, 0
  %v497 = vsel %vm462, %v457, 0
  %v500 = vsel %vm462, %v458, 0
  %v503 = vsel %vm462, %v459, 0
  %v506 = vsel %vm462, %v460, 0
  %v509 = vsel %vm462, %v461, 0
  %511 = vmatprep.subr.mxu0 0.0
  %512 = vmatpush1.msra.mxu0 %v72
  %513 = vmatprep.subr.mxu0 0.0
  %514 = vmatpush1.msra.mxu0 %v73
  %515 = vmatprep.subr.mxu0 0.0
  %516 = vmatpush1.msra.mxu0 %v74
  %517 = vmatprep.subr.mxu0 0.0
  %518 = vmatpush1.msra.mxu0 %v75
  %519 = vmatprep.subr.mxu0 0.0
  %520 = vmatpush1.msra.mxu0 0.0
  %521 = vmatprep.subr.mxu0 0.0
  %522 = vmatpush1.msra.mxu0 0.0
  %523 = vmatprep.subr.mxu0 0.0
  %524 = vmatpush1.msra.mxu0 0.0
  %525 = vmatprep.subr.mxu0 0.0
  %526 = vmatpush1.msra.mxu0 0.0
  %527 = vmatprep.subr.mxu0 0.0
  %528 = vmatpush1.msra.mxu0 0.0
  %529 = vmatprep.subr.mxu0 0.0
  %530 = vmatpush1.msra.mxu0 0.0
  %531 = vmatprep.subr.mxu0 0.0
  %532 = vmatpush1.msra.mxu0 0.0
  %533 = vmatprep.subr.mxu0 0.0
  %534 = vmatpush1.msra.mxu0 0.0
  %535 = vmatprep.subr.mxu0 0.0
  %536 = vmatpush1.msra.mxu0 0.0
  %537 = vmatprep.subr.mxu0 0.0
  %538 = vmatpush1.msra.mxu0 0.0
  %539 = vmatprep.subr.mxu0 0.0
  %540 = vmatpush1.msra.mxu0 0.0
  %541 = vmatprep.subr.mxu0 0.0
  %542 = vmatpush1.msra.mxu0 0.0
  %543 = vmatprep.subr.mxu0 0.0
  %544 = vmatpush1.msra.mxu0 0.0
  %545 = vmatprep.subr.mxu0 0.0
  %546 = vmatpush1.msra.mxu0 0.0
  %547 = vmatprep.subr.mxu0 0.0
  %548 = vmatpush1.msra.mxu0 0.0
  %549 = vmatprep.subr.mxu0 0.0
  %550 = vmatpush1.msra.mxu0 0.0
  %551 = vmatprep.subr.mxu0 0.0
  %552 = vmatpush1.msra.mxu0 0.0
  %553 = vmatprep.subr.mxu0 0.0
  %554 = vmatpush1.msra.mxu0 0.0
  %555 = vmatprep.subr.mxu0 0.0
  %556 = vmatpush1.msra.mxu0 0.0
  %557 = vmatprep.subr.mxu0 0.0
  %558 = vmatpush1.msra.mxu0 0.0
  %559 = vmatprep.subr.mxu0 0.0
  %560 = vmatpush1.msra.mxu0 0.0
  %561 = vmatprep.subr.mxu0 0.0
  %562 = vmatpush1.msra.mxu0 0.0
  %563 = vmatprep.subr.mxu0 0.0
  %564 = vmatpush1.msra.mxu0 0.0
  %565 = vmatprep.subr.mxu0 0.0
  %566 = vmatpush1.msra.mxu0 0.0
  %567 = vmatprep.subr.mxu0 0.0
  %568 = vmatpush1.msra.mxu0 0.0
  %569 = vmatprep.subr.mxu0 0.0
  %570 = vmatpush1.msra.mxu0 0.0
  %571 = vmatprep.subr.mxu0 0.0
  %572 = vmatpush1.msra.mxu0 0.0
  %573 = vmatprep.subr.mxu0 0.0
  %574 = vmatpush1.msra.mxu0 0.0
  %575 = vmatprep.mubr.f32.mxu0 0.0
  %576 = vmatmul.mubr.f32.gmra.mrb[0].mxu0 %v464
  %v577 = vpop.f32.mrb[0].mxu0
  %v578 = vadd.f32 0.0, %v577
  %v579 = vpop.f32.mrb[0].mxu0
  %580 = vmatprep.mubr.f32.mxu0 0.0
  %581 = vmatmul.mubr.f32.gmra.mrb[0].mxu0 %v467
  %v582 = vpop.f32.mrb[0].mxu0
  %v583 = vadd.f32 0.0, %v582
  %v584 = vpop.f32.mrb[0].mxu0
  %585 = vmatprep.mubr.f32.mxu0 0.0
  %586 = vmatmul.mubr.f32.gmra.mrb[0].mxu0 %v470
  %v587 = vpop.f32.mrb[0].mxu0
  %v588 = vadd.f32 0.0, %v587
  %v589 = vpop.f32.mrb[0].mxu0
  %590 = vmatprep.mubr.f32.mxu0 0.0
  %591 = vmatmul.mubr.f32.gmra.mrb[0].mxu0 %v473
  %v592 = vpop.f32.mrb[0].mxu0
  %v593 = vadd.f32 0.0, %v592
  %v594 = vpop.f32.mrb[0].mxu0
  %595 = vmatprep.mubr.f32.mxu0 0.0
  %596 = vmatmul.mubr.f32.gmra.mrb[0].mxu0 %v476
  %v597 = vpop.f32.mrb[0].mxu0
  %v598 = vadd.f32 0.0, %v597
  %v599 = vpop.f32.mrb[0].mxu0
  %600 = vmatprep.mubr.f32.mxu0 0.0
  %601 = vmatmul.mubr.f32.gmra.mrb[0].mxu0 %v479
  %v602 = vpop.f32.mrb[0].mxu0
  %v603 = vadd.f32 0.0, %v602
  %v604 = vpop.f32.mrb[0].mxu0
  %605 = vmatprep.mubr.f32.mxu0 0.0
  %606 = vmatmul.mubr.f32.gmra.mrb[0].mxu0 %v482
  %v607 = vpop.f32.mrb[0].mxu0
  %v608 = vadd.f32 0.0, %v607
  %v609 = vpop.f32.mrb[0].mxu0
  %610 = vmatprep.mubr.f32.mxu0 0.0
  %611 = vmatmul.mubr.f32.gmra.mrb[0].mxu0 %v485
  %v612 = vpop.f32.mrb[0].mxu0
  %v613 = vadd.f32 0.0, %v612
  %v614 = vpop.f32.mrb[0].mxu0
  %615 = vmatprep.mubr.f32.mxu0 0.0
  %616 = vmatmul.mubr.f32.gmra.mrb[0].mxu0 %v488
  %v617 = vpop.f32.mrb[0].mxu0
  %v618 = vadd.f32 0.0, %v617
  %v619 = vpop.f32.mrb[0].mxu0
  %620 = vmatprep.mubr.f32.mxu0 0.0
  %621 = vmatmul.mubr.f32.gmra.mrb[0].mxu0 %v491
  %v622 = vpop.f32.mrb[0].mxu0
  %v623 = vadd.f32 0.0, %v622
  %v624 = vpop.f32.mrb[0].mxu0
  %625 = vmatprep.mubr.f32.mxu0 0.0
  %626 = vmatmul.mubr.f32.gmra.mrb[0].mxu0 %v494
  %v627 = vpop.f32.mrb[0].mxu0
  %v628 = vadd.f32 0.0, %v627
  %v629 = vpop.f32.mrb[0].mxu0
  %630 = vmatprep.mubr.f32.mxu0 0.0
  %631 = vmatmul.mubr.f32.gmra.mrb[0].mxu0 %v497
  %v632 = vpop.f32.mrb[0].mxu0
  %v633 = vadd.f32 0.0, %v632
  %v634 = vpop.f32.mrb[0].mxu0
  %635 = vmatprep.mubr.f32.mxu0 0.0
  %636 = vmatmul.mubr.f32.gmra.mrb[0].mxu0 %v500
  %v637 = vpop.f32.mrb[0].mxu0
  %v638 = vadd.f32 0.0, %v637
  %v639 = vpop.f32.mrb[0].mxu0
  %640 = vmatprep.mubr.f32.mxu0 0.0
  %641 = vmatmul.mubr.f32.gmra.mrb[0].mxu0 %v503
  %v642 = vpop.f32.mrb[0].mxu0
  %v643 = vadd.f32 0.0, %v642
  %v644 = vpop.f32.mrb[0].mxu0
  %645 = vmatprep.mubr.f32.mxu0 0.0
  %646 = vmatmul.mubr.f32.gmra.mrb[0].mxu0 %v506
  %v647 = vpop.f32.mrb[0].mxu0
  %v648 = vadd.f32 0.0, %v647
  %v649 = vpop.f32.mrb[0].mxu0
  %650 = vmatprep.mubr.f32.mxu0 0.0
  %651 = vmatmul.mubr.f32.gmra.mrb[0].mxu0 %v509
  %v652 = vpop.f32.mrb[0].mxu0
  %v653 = vadd.f32 0.0, %v652
  %v654 = vpop.f32.mrb[0].mxu0
  %655 = vdwg.mxu0
  %656 = vset.pattern.permute.xlu0 0
  %657 = vperm.xlu0 %656, %v52
  %v658 = vpop.permute.xlu0 %657
  %659 = vset.pattern.permute.xlu0 0
  %660 = vperm.xlu0 %659, %v53
  %v661 = vpop.permute.xlu0 %660
  %662 = vset.pattern.permute.xlu0 0
  %663 = vperm.xlu0 %662, %v54
  %v664 = vpop.permute.xlu0 %663
  %665 = vset.pattern.permute.xlu0 0
  %666 = vperm.xlu0 %665, %v55
  %v667 = vpop.permute.xlu0 %666
  %668 = vset.pattern.permute.xlu0 0
  %669 = vperm.xlu0 %668, %v56
  %v670 = vpop.permute.xlu0 %669
  %671 = vset.pattern.permute.xlu0 0
  %672 = vperm.xlu0 %671, %v57
  %v673 = vpop.permute.xlu0 %672
  %674 = vset.pattern.permute.xlu0 0
  %675 = vperm.xlu0 %674, %v58
  %v676 = vpop.permute.xlu0 %675
  %677 = vset.pattern.permute.xlu0 0
  %678 = vperm.xlu0 %677, %v59
  %v679 = vpop.permute.xlu0 %678
  %680 = vset.pattern.permute.xlu0 0
  %681 = vperm.xlu0 %680, %v60
  %v682 = vpop.permute.xlu0 %681
  %683 = vset.pattern.permute.xlu0 0
  %684 = vperm.xlu0 %683, %v61
  %v685 = vpop.permute.xlu0 %684
  %686 = vset.pattern.permute.xlu0 0
  %687 = vperm.xlu0 %686, %v62
  %v688 = vpop.permute.xlu0 %687
  %689 = vset.pattern.permute.xlu0 0
  %690 = vperm.xlu0 %689, %v63
  %v691 = vpop.permute.xlu0 %690
  %692 = vset.pattern.permute.xlu0 0
  %693 = vperm.xlu0 %692, %v64
  %v694 = vpop.permute.xlu0 %693
  %695 = vset.pattern.permute.xlu0 0
  %696 = vperm.xlu0 %695, %v65
  %v697 = vpop.permute.xlu0 %696
  %698 = vset.pattern.permute.xlu0 0
  %699 = vperm.xlu0 %698, %v66
  %v700 = vpop.permute.xlu0 %699
  %701 = vset.pattern.permute.xlu0 0
  %702 = vperm.xlu0 %701, %v67
  %v703 = vpop.permute.xlu0 %702
  %vm704 = vcmp.eq.s32.totalorder %v69, %v658
  %vm705 = vcmp.eq.s32.totalorder %v69, %v661
  %vm706 = vcmp.eq.s32.totalorder %v69, %v664
  %vm707 = vcmp.eq.s32.totalorder %v69, %v667
  %vm708 = vcmp.eq.s32.totalorder %v69, %v670
  %vm709 = vcmp.eq.s32.totalorder %v69, %v673
  %vm710 = vcmp.eq.s32.totalorder %v69, %v676
  %vm711 = vcmp.eq.s32.totalorder %v69, %v679
  %vm712 = vcmp.eq.s32.totalorder %v69, %v682
  %vm713 = vcmp.eq.s32.totalorder %v69, %v685
  %vm714 = vcmp.eq.s32.totalorder %v69, %v688
  %vm715 = vcmp.eq.s32.totalorder %v69, %v691
  %vm716 = vcmp.eq.s32.totalorder %v69, %v694
  %vm717 = vcmp.eq.s32.totalorder %v69, %v697
  %vm718 = vcmp.eq.s32.totalorder %v69, %v700
  %vm719 = vcmp.eq.s32.totalorder %v69, %v703
  %v720 = vsel %vm704, 1, 0
  %v721 = vsel %vm705, 1, 0
  %v722 = vsel %vm706, 1, 0
  %v723 = vsel %vm707, 1, 0
  %v724 = vsel %vm708, 1, 0
  %v725 = vsel %vm709, 1, 0
  %v726 = vsel %vm710, 1, 0
  %v727 = vsel %vm711, 1, 0
  %v728 = vsel %vm712, 1, 0
  %v729 = vsel %vm713, 1, 0
  %v730 = vsel %vm714, 1, 0
  %v731 = vsel %vm715, 1, 0
  %v732 = vsel %vm716, 1, 0
  %v733 = vsel %vm717, 1, 0
  %v734 = vsel %vm718, 1, 0
  %v735 = vsel %vm719, 1, 0
  %v736 = vcvt.s32.f32 %v720
  %v737 = vcvt.s32.f32 %v721
  %v738 = vcvt.s32.f32 %v722
  %v739 = vcvt.s32.f32 %v723
  %v740 = vcvt.s32.f32 %v724
  %v741 = vcvt.s32.f32 %v725
  %v742 = vcvt.s32.f32 %v726
  %v743 = vcvt.s32.f32 %v727
  %v744 = vcvt.s32.f32 %v728
  %v745 = vcvt.s32.f32 %v729
  %v746 = vcvt.s32.f32 %v730
  %v747 = vcvt.s32.f32 %v731
  %v748 = vcvt.s32.f32 %v732
  %v749 = vcvt.s32.f32 %v733
  %v750 = vcvt.s32.f32 %v734
  %v751 = vcvt.s32.f32 %v735
  %v753 = vsel %vm462, %v736, 0
  %v756 = vsel %vm462, %v737, 0
  %v759 = vsel %vm462, %v738, 0
  %v762 = vsel %vm462, %v739, 0
  %v765 = vsel %vm462, %v740, 0
  %v768 = vsel %vm462, %v741, 0
  %v771 = vsel %vm462, %v742, 0
  %v774 = vsel %vm462, %v743, 0
  %v777 = vsel %vm462, %v744, 0
  %v780 = vsel %vm462, %v745, 0
  %v783 = vsel %vm462, %v746, 0
  %v786 = vsel %vm462, %v747, 0
  %v789 = vsel %vm462, %v748, 0
  %v792 = vsel %vm462, %v749, 0
  %v795 = vsel %vm462, %v750, 0
  %v798 = vsel %vm462, %v751, 0
  %800 = vmatprep.subr.mxu0 0.0
  %801 = vmatpush1.msra.mxu0 %v72
  %802 = vmatprep.subr.mxu0 0.0
  %803 = vmatpush1.msra.mxu0 %v73
  %804 = vmatprep.subr.mxu0 0.0
  %805 = vmatpush1.msra.mxu0 %v74
  %806 = vmatprep.subr.mxu0 0.0
  %807 = vmatpush1.msra.mxu0 %v75
  %808 = vmatprep.subr.mxu0 0.0
  %809 = vmatpush1.msra.mxu0 0.0
  %810 = vmatprep.subr.mxu0 0.0
  %811 = vmatpush1.msra.mxu0 0.0
  %812 = vmatprep.subr.mxu0 0.0
  %813 = vmatpush1.msra.mxu0 0.0
  %814 = vmatprep.subr.mxu0 0.0
  %815 = vmatpush1.msra.mxu0 0.0
  %816 = vmatprep.subr.mxu0 0.0
  %817 = vmatpush1.msra.mxu0 0.0
  %818 = vmatprep.subr.mxu0 0.0
  %819 = vmatpush1.msra.mxu0 0.0
  %820 = vmatprep.subr.mxu0 0.0
  %821 = vmatpush1.msra.mxu0 0.0
  %822 = vmatprep.subr.mxu0 0.0
  %823 = vmatpush1.msra.mxu0 0.0
  %824 = vmatprep.subr.mxu0 0.0
  %825 = vmatpush1.msra.mxu0 0.0
  %826 = vmatprep.subr.mxu0 0.0
  %827 = vmatpush1.msra.mxu0 0.0
  %828 = vmatprep.subr.mxu0 0.0
  %829 = vmatpush1.msra.mxu0 0.0
  %830 = vmatprep.subr.mxu0 0.0
  %831 = vmatpush1.msra.mxu0 0.0
  %832 = vmatprep.subr.mxu0 0.0
  %833 = vmatpush1.msra.mxu0 0.0
  %834 = vmatprep.subr.mxu0 0.0
  %835 = vmatpush1.msra.mxu0 0.0
  %836 = vmatprep.subr.mxu0 0.0
  %837 = vmatpush1.msra.mxu0 0.0
  %838 = vmatprep.subr.mxu0 0.0
  %839 = vmatpush1.msra.mxu0 0.0
  %840 = vmatprep.subr.mxu0 0.0
  %841 = vmatpush1.msra.mxu0 0.0
  %842 = vmatprep.subr.mxu0 0.0
  %843 = vmatpush1.msra.mxu0 0.0
  %844 = vmatprep.subr.mxu0 0.0
  %845 = vmatpush1.msra.mxu0 0.0
  %846 = vmatprep.subr.mxu0 0.0
  %847 = vmatpush1.msra.mxu0 0.0
  %848 = vmatprep.subr.mxu0 0.0
  %849 = vmatpush1.msra.mxu0 0.0
  %850 = vmatprep.subr.mxu0 0.0
  %851 = vmatpush1.msra.mxu0 0.0
  %852 = vmatprep.subr.mxu0 0.0
  %853 = vmatpush1.msra.mxu0 0.0
  %854 = vmatprep.subr.mxu0 0.0
  %855 = vmatpush1.msra.mxu0 0.0
  %856 = vmatprep.subr.mxu0 0.0
  %857 = vmatpush1.msra.mxu0 0.0
  %858 = vmatprep.subr.mxu0 0.0
  %859 = vmatpush1.msra.mxu0 0.0
  %860 = vmatprep.subr.mxu0 0.0
  %861 = vmatpush1.msra.mxu0 0.0
  %862 = vmatprep.subr.mxu0 0.0
  %863 = vmatpush1.msra.mxu0 0.0
  %864 = vmatprep.mubr.f32.mxu0 0.0
  %865 = vmatmul.mubr.f32.gmra.mrb[0].mxu0 %v753
  %v866 = vpop.f32.mrb[0].mxu0
  %v867 = vadd.f32 0.0, %v866
  %v868 = vpop.f32.mrb[0].mxu0
  %869 = vmatprep.mubr.f32.mxu0 0.0
  %870 = vmatmul.mubr.f32.gmra.mrb[0].mxu0 %v756
  %v871 = vpop.f32.mrb[0].mxu0
  %v872 = vadd.f32 0.0, %v871
  %v873 = vpop.f32.mrb[0].mxu0
  %874 = vmatprep.mubr.f32.mxu0 0.0
  %875 = vmatmul.mubr.f32.gmra.mrb[0].mxu0 %v759
  %v876 = vpop.f32.mrb[0].mxu0
  %v877 = vadd.f32 0.0, %v876
  %v878 = vpop.f32.mrb[0].mxu0
  %879 = vmatprep.mubr.f32.mxu0 0.0
  %880 = vmatmul.mubr.f32.gmra.mrb[0].mxu0 %v762
  %v881 = vpop.f32.mrb[0].mxu0
  %v882 = vadd.f32 0.0, %v881
  %v883 = vpop.f32.mrb[0].mxu0
  %884 = vmatprep.mubr.f32.mxu0 0.0
  %885 = vmatmul.mubr.f32.gmra.mrb[0].mxu0 %v765
  %v886 = vpop.f32.mrb[0].mxu0
  %v887 = vadd.f32 0.0, %v886
  %v888 = vpop.f32.mrb[0].mxu0
  %889 = vmatprep.mubr.f32.mxu0 0.0
  %890 = vmatmul.mubr.f32.gmra.mrb[0].mxu0 %v768
  %v891 = vpop.f32.mrb[0].mxu0
  %v892 = vadd.f32 0.0, %v891
  %v893 = vpop.f32.mrb[0].mxu0
  %894 = vmatprep.mubr.f32.mxu0 0.0
  %895 = vmatmul.mubr.f32.gmra.mrb[0].mxu0 %v771
  %v896 = vpop.f32.mrb[0].mxu0
  %v897 = vadd.f32 0.0, %v896
  %v898 = vpop.f32.mrb[0].mxu0
  %899 = vmatprep.mubr.f32.mxu0 0.0
  %900 = vmatmul.mubr.f32.gmra.mrb[0].mxu0 %v774
  %v901 = vpop.f32.mrb[0].mxu0
  %v902 = vadd.f32 0.0, %v901
  %v903 = vpop.f32.mrb[0].mxu0
  %904 = vmatprep.mubr.f32.mxu0 0.0
  %905 = vmatmul.mubr.f32.gmra.mrb[0].mxu0 %v777
  %v906 = vpop.f32.mrb[0].mxu0
  %v907 = vadd.f32 0.0, %v906
  %v908 = vpop.f32.mrb[0].mxu0
  %909 = vmatprep.mubr.f32.mxu0 0.0
  %910 = vmatmul.mubr.f32.gmra.mrb[0].mxu0 %v780
  %v911 = vpop.f32.mrb[0].mxu0
  %v912 = vadd.f32 0.0, %v911
  %v913 = vpop.f32.mrb[0].mxu0
  %914 = vmatprep.mubr.f32.mxu0 0.0
  %915 = vmatmul.mubr.f32.gmra.mrb[0].mxu0 %v783
  %v916 = vpop.f32.mrb[0].mxu0
  %v917 = vadd.f32 0.0, %v916
  %v918 = vpop.f32.mrb[0].mxu0
  %919 = vmatprep.mubr.f32.mxu0 0.0
  %920 = vmatmul.mubr.f32.gmra.mrb[0].mxu0 %v786
  %v921 = vpop.f32.mrb[0].mxu0
  %v922 = vadd.f32 0.0, %v921
  %v923 = vpop.f32.mrb[0].mxu0
  %924 = vmatprep.mubr.f32.mxu0 0.0
  %925 = vmatmul.mubr.f32.gmra.mrb[0].mxu0 %v789
  %v926 = vpop.f32.mrb[0].mxu0
  %v927 = vadd.f32 0.0, %v926
  %v928 = vpop.f32.mrb[0].mxu0
  %929 = vmatprep.mubr.f32.mxu0 0.0
  %930 = vmatmul.mubr.f32.gmra.mrb[0].mxu0 %v792
  %v931 = vpop.f32.mrb[0].mxu0
  %v932 = vadd.f32 0.0, %v931
  %v933 = vpop.f32.mrb[0].mxu0
  %934 = vmatprep.mubr.f32.mxu0 0.0
  %935 = vmatmul.mubr.f32.gmra.mrb[0].mxu0 %v795
  %v936 = vpop.f32.mrb[0].mxu0
  %v937 = vadd.f32 0.0, %v936
  %v938 = vpop.f32.mrb[0].mxu0
  %939 = vmatprep.mubr.f32.mxu0 0.0
  %940 = vmatmul.mubr.f32.gmra.mrb[0].mxu0 %v798
  %v941 = vpop.f32.mrb[0].mxu0
  %v942 = vadd.f32 0.0, %v941
  %v943 = vpop.f32.mrb[0].mxu0
  %944 = vdwg.mxu0
  %v945 = vmul.f32 %v288, %v578
  %v946 = vmul.f32 %v293, %v583
  %v947 = vmul.f32 %v298, %v588
  %v948 = vmul.f32 %v303, %v593
  %v949 = vmul.f32 %v308, %v598
  %v950 = vmul.f32 %v313, %v603
  %v951 = vmul.f32 %v318, %v608
  %v952 = vmul.f32 %v323, %v613
  %v953 = vmul.f32 %v328, %v618
  %v954 = vmul.f32 %v333, %v623
  %v955 = vmul.f32 %v338, %v628
  %v956 = vmul.f32 %v343, %v633
  %v957 = vmul.f32 %v348, %v638
  %v958 = vmul.f32 %v353, %v643
  %v959 = vmul.f32 %v358, %v648
  %v960 = vmul.f32 %v363, %v653
  %vm961 = vcmask 31744
  %v963 = vsel %vm961, 1.0, 0
  %v966 = vsel %vm961, %v945, 0
  %v969 = vsel %vm961, %v946, 0
  %v972 = vsel %vm961, %v947, 0
  %v975 = vsel %vm961, %v948, 0
  %v978 = vsel %vm961, %v949, 0
  %v981 = vsel %vm961, %v950, 0
  %v984 = vsel %vm961, %v951, 0
  %v987 = vsel %vm961, %v952, 0
  %v990 = vsel %vm961, %v953, 0
  %v993 = vsel %vm961, %v954, 0
  %v996 = vsel %vm961, %v955, 0
  %v999 = vsel %vm961, %v956, 0
  %v1002 = vsel %vm961, %v957, 0
  %v1005 = vsel %vm961, %v958, 0
  %v1008 = vsel %vm961, %v959, 0
  %v1011 = vsel %vm961, %v960, 0
  %1013 = vmatprep.subr.mxu0 0.0
  %1014 = vmatpush1.xpose.msra.mxu0 %v966
  %1015 = vmatprep.subr.mxu0 0.0
  %1016 = vmatpush1.xpose.msra.mxu0 %v969
  %1017 = vmatprep.subr.mxu0 0.0
  %1018 = vmatpush1.xpose.msra.mxu0 %v972
  %1019 = vmatprep.subr.mxu0 0.0
  %1020 = vmatpush1.xpose.msra.mxu0 %v975
  %1021 = vmatprep.subr.mxu0 0.0
  %1022 = vmatpush1.xpose.msra.mxu0 %v978
  %1023 = vmatprep.subr.mxu0 0.0
  %1024 = vmatpush1.xpose.msra.mxu0 %v981
  %1025 = vmatprep.subr.mxu0 0.0
  %1026 = vmatpush1.xpose.msra.mxu0 %v984
  %1027 = vmatprep.subr.mxu0 0.0
  %1028 = vmatpush1.xpose.msra.mxu0 %v987
  %1029 = vmatprep.subr.mxu0 0.0
  %1030 = vmatpush1.xpose.msra.mxu0 %v990
  %1031 = vmatprep.subr.mxu0 0.0
  %1032 = vmatpush1.xpose.msra.mxu0 %v993
  %1033 = vmatprep.subr.mxu0 0.0
  %1034 = vmatpush1.xpose.msra.mxu0 %v996
  %1035 = vmatprep.subr.mxu0 0.0
  %1036 = vmatpush1.xpose.msra.mxu0 %v999
  %1037 = vmatprep.subr.mxu0 0.0
  %1038 = vmatpush1.xpose.msra.mxu0 %v1002
  %1039 = vmatprep.subr.mxu0 0.0
  %1040 = vmatpush1.xpose.msra.mxu0 %v1005
  %1041 = vmatprep.subr.mxu0 0.0
  %1042 = vmatpush1.xpose.msra.mxu0 %v1008
  %1043 = vmatprep.subr.mxu0 0.0
  %1044 = vmatpush1.xpose.msra.mxu0 %v1011
  %1045 = vmatprep.subr.mxu0 0.0
  %1046 = vmatpush1.xpose.msra.mxu0 0.0
  %1047 = vmatprep.subr.mxu0 0.0
  %1048 = vmatpush1.xpose.msra.mxu0 0.0
  %1049 = vmatprep.subr.mxu0 0.0
  %1050 = vmatpush1.xpose.msra.mxu0 0.0
  %1051 = vmatprep.subr.mxu0 0.0
  %1052 = vmatpush1.xpose.msra.mxu0 0.0
  %1053 = vmatprep.subr.mxu0 0.0
  %1054 = vmatpush1.xpose.msra.mxu0 0.0
  %1055 = vmatprep.subr.mxu0 0.0
  %1056 = vmatpush1.xpose.msra.mxu0 0.0
  %1057 = vmatprep.subr.mxu0 0.0
  %1058 = vmatpush1.xpose.msra.mxu0 0.0
  %1059 = vmatprep.subr.mxu0 0.0
  %1060 = vmatpush1.xpose.msra.mxu0 0.0
  %1061 = vmatprep.subr.mxu0 0.0
  %1062 = vmatpush1.xpose.msra.mxu0 0.0
  %1063 = vmatprep.subr.mxu0 0.0
  %1064 = vmatpush1.xpose.msra.mxu0 0.0
  %1065 = vmatprep.subr.mxu0 0.0
  %1066 = vmatpush1.xpose.msra.mxu0 0.0
  %1067 = vmatprep.subr.mxu0 0.0
  %1068 = vmatpush1.xpose.msra.mxu0 0.0
  %1069 = vmatprep.subr.mxu0 0.0
  %1070 = vmatpush1.xpose.msra.mxu0 0.0
  %1071 = vmatprep.subr.mxu0 0.0
  %1072 = vmatpush1.xpose.msra.mxu0 0.0
  %1073 = vmatprep.subr.mxu0 0.0
  %1074 = vmatpush1.xpose.msra.mxu0 0.0
  %1075 = vmatprep.subr.mxu0 0.0
  %1076 = vmatpush1.xpose.msra.mxu0 0.0
  %1077 = vmatprep.mubr.f32.mxu0 0.0
  %1078 = vmatmul.mubr.f32.gmra.mrb[0].mxu0 %v963
  %v1079 = vpop.f32.mrb[0].mxu0
  %v1080 = vadd.f32 0.0, %v1079
  %v1081 = vpop.f32.mrb[0].mxu0
  %1082 = vdwg.mxu0
  %1083 = vst [vmem:[%s5] sm:$0x1] %v1080
  %v1084 = vmul.f32 %v288, %v867
  %v1085 = vmul.f32 %v293, %v872
  %v1086 = vmul.f32 %v298, %v877
  %v1087 = vmul.f32 %v303, %v882
  %v1088 = vmul.f32 %v308, %v887
  %v1089 = vmul.f32 %v313, %v892
  %v1090 = vmul.f32 %v318, %v897
  %v1091 = vmul.f32 %v323, %v902
  %v1092 = vmul.f32 %v328, %v907
  %v1093 = vmul.f32 %v333, %v912
  %v1094 = vmul.f32 %v338, %v917
  %v1095 = vmul.f32 %v343, %v922
  %v1096 = vmul.f32 %v348, %v927
  %v1097 = vmul.f32 %v353, %v932
  %v1098 = vmul.f32 %v358, %v937
  %v1099 = vmul.f32 %v363, %v942
  %v1101 = vsel %vm961, %v1084, 0
  %v1104 = vsel %vm961, %v1085, 0
  %v1107 = vsel %vm961, %v1086, 0
  %v1110 = vsel %vm961, %v1087, 0
  %v1113 = vsel %vm961, %v1088, 0
  %v1116 = vsel %vm961, %v1089, 0
  %v1119 = vsel %vm961, %v1090, 0
  %v1122 = vsel %vm961, %v1091, 0
  %v1125 = vsel %vm961, %v1092, 0
  %v1128 = vsel %vm961, %v1093, 0
  %v1131 = vsel %vm961, %v1094, 0
  %v1134 = vsel %vm961, %v1095, 0
  %v1137 = vsel %vm961, %v1096, 0
  %v1140 = vsel %vm961, %v1097, 0
  %v1143 = vsel %vm961, %v1098, 0
  %v1146 = vsel %vm961, %v1099, 0
  %1148 = vmatprep.subr.mxu0 0.0
  %1149 = vmatpush1.xpose.msra.mxu0 %v1101
  %1150 = vmatprep.subr.mxu0 0.0
  %1151 = vmatpush1.xpose.msra.mxu0 %v1104
  %1152 = vmatprep.subr.mxu0 0.0
  %1153 = vmatpush1.xpose.msra.mxu0 %v1107
  %1154 = vmatprep.subr.mxu0 0.0
  %1155 = vmatpush1.xpose.msra.mxu0 %v1110
  %1156 = vmatprep.subr.mxu0 0.0
  %1157 = vmatpush1.xpose.msra.mxu0 %v1113
  %1158 = vmatprep.subr.mxu0 0.0
  %1159 = vmatpush1.xpose.msra.mxu0 %v1116
  %1160 = vmatprep.subr.mxu0 0.0
  %1161 = vmatpush1.xpose.msra.mxu0 %v1119
  %1162 = vmatprep.subr.mxu0 0.0
  %1163 = vmatpush1.xpose.msra.mxu0 %v1122
  %1164 = vmatprep.subr.mxu0 0.0
  %1165 = vmatpush1.xpose.msra.mxu0 %v1125
  %1166 = vmatprep.subr.mxu0 0.0
  %1167 = vmatpush1.xpose.msra.mxu0 %v1128
  %1168 = vmatprep.subr.mxu0 0.0
  %1169 = vmatpush1.xpose.msra.mxu0 %v1131
  %1170 = vmatprep.subr.mxu0 0.0
  %1171 = vmatpush1.xpose.msra.mxu0 %v1134
  %1172 = vmatprep.subr.mxu0 0.0
  %1173 = vmatpush1.xpose.msra.mxu0 %v1137
  %1174 = vmatprep.subr.mxu0 0.0
  %1175 = vmatpush1.xpose.msra.mxu0 %v1140
  %1176 = vmatprep.subr.mxu0 0.0
  %1177 = vmatpush1.xpose.msra.mxu0 %v1143
  %1178 = vmatprep.subr.mxu0 0.0
  %1179 = vmatpush1.xpose.msra.mxu0 %v1146
  %1180 = vmatprep.subr.mxu0 0.0
  %1181 = vmatpush1.xpose.msra.mxu0 0.0
  %1182 = vmatprep.subr.mxu0 0.0
  %1183 = vmatpush1.xpose.msra.mxu0 0.0
  %1184 = vmatprep.subr.mxu0 0.0
  %1185 = vmatpush1.xpose.msra.mxu0 0.0
  %1186 = vmatprep.subr.mxu0 0.0
  %1187 = vmatpush1.xpose.msra.mxu0 0.0
  %1188 = vmatprep.subr.mxu0 0.0
  %1189 = vmatpush1.xpose.msra.mxu0 0.0
  %1190 = vmatprep.subr.mxu0 0.0
  %1191 = vmatpush1.xpose.msra.mxu0 0.0
  %1192 = vmatprep.subr.mxu0 0.0
  %1193 = vmatpush1.xpose.msra.mxu0 0.0
  %1194 = vmatprep.subr.mxu0 0.0
  %1195 = vmatpush1.xpose.msra.mxu0 0.0
  %1196 = vmatprep.subr.mxu0 0.0
  %1197 = vmatpush1.xpose.msra.mxu0 0.0
  %1198 = vmatprep.subr.mxu0 0.0
  %1199 = vmatpush1.xpose.msra.mxu0 0.0
  %1200 = vmatprep.subr.mxu0 0.0
  %1201 = vmatpush1.xpose.msra.mxu0 0.0
  %1202 = vmatprep.subr.mxu0 0.0
  %1203 = vmatpush1.xpose.msra.mxu0 0.0
  %1204 = vmatprep.subr.mxu0 0.0
  %1205 = vmatpush1.xpose.msra.mxu0 0.0
  %1206 = vmatprep.subr.mxu0 0.0
  %1207 = vmatpush1.xpose.msra.mxu0 0.0
  %1208 = vmatprep.subr.mxu0 0.0
  %1209 = vmatpush1.xpose.msra.mxu0 0.0
  %1210 = vmatprep.subr.mxu0 0.0
  %1211 = vmatpush1.xpose.msra.mxu0 0.0
  %1212 = vmatprep.mubr.f32.mxu0 0.0
  %1213 = vmatmul.mubr.f32.gmra.mrb[0].mxu0 %v963
  %v1214 = vpop.f32.mrb[0].mxu0
  %v1215 = vadd.f32 0.0, %v1214
  %v1216 = vpop.f32.mrb[0].mxu0
  %1217 = vdwg.mxu0
  %1218 = vst [vmem:[%s5 + $0x1] sm:$0x1] %v1215
  %v1219 = vmul.f32 %v288, %v288
  %v1220 = vmul.f32 %v293, %v293
  %v1221 = vmul.f32 %v298, %v298
  %v1222 = vmul.f32 %v303, %v303
  %v1223 = vmul.f32 %v308, %v308
  %v1224 = vmul.f32 %v313, %v313
  %v1225 = vmul.f32 %v318, %v318
  %v1226 = vmul.f32 %v323, %v323
  %v1227 = vmul.f32 %v328, %v328
  %v1228 = vmul.f32 %v333, %v333
  %v1229 = vmul.f32 %v338, %v338
  %v1230 = vmul.f32 %v343, %v343
  %v1231 = vmul.f32 %v348, %v348
  %v1232 = vmul.f32 %v353, %v353
  %v1233 = vmul.f32 %v358, %v358
  %v1234 = vmul.f32 %v363, %v363
  %v1235 = vmul.f32 %v578, %v578
  %v1236 = vmul.f32 %v583, %v583
  %v1237 = vmul.f32 %v588, %v588
  %v1238 = vmul.f32 %v593, %v593
  %v1239 = vmul.f32 %v598, %v598
  %v1240 = vmul.f32 %v603, %v603
  %v1241 = vmul.f32 %v608, %v608
  %v1242 = vmul.f32 %v613, %v613
  %v1243 = vmul.f32 %v618, %v618
  %v1244 = vmul.f32 %v623, %v623
  %v1245 = vmul.f32 %v628, %v628
  %v1246 = vmul.f32 %v633, %v633
  %v1247 = vmul.f32 %v638, %v638
  %v1248 = vmul.f32 %v643, %v643
  %v1249 = vmul.f32 %v648, %v648
  %v1250 = vmul.f32 %v653, %v653
  %v1251 = vadd.f32 %v1219, %v1235
  %v1252 = vadd.f32 %v1220, %v1236
  %v1253 = vadd.f32 %v1221, %v1237
  %v1254 = vadd.f32 %v1222, %v1238
  %v1255 = vadd.f32 %v1223, %v1239
  %v1256 = vadd.f32 %v1224, %v1240
  %v1257 = vadd.f32 %v1225, %v1241
  %v1258 = vadd.f32 %v1226, %v1242
  %v1259 = vadd.f32 %v1227, %v1243
  %v1260 = vadd.f32 %v1228, %v1244
  %v1261 = vadd.f32 %v1229, %v1245
  %v1262 = vadd.f32 %v1230, %v1246
  %v1263 = vadd.f32 %v1231, %v1247
  %v1264 = vadd.f32 %v1232, %v1248
  %v1265 = vadd.f32 %v1233, %v1249
  %v1266 = vadd.f32 %v1234, %v1250
  %v1267 = vmul.f32 %v867, %v867
  %v1268 = vmul.f32 %v872, %v872
  %v1269 = vmul.f32 %v877, %v877
  %v1270 = vmul.f32 %v882, %v882
  %v1271 = vmul.f32 %v887, %v887
  %v1272 = vmul.f32 %v892, %v892
  %v1273 = vmul.f32 %v897, %v897
  %v1274 = vmul.f32 %v902, %v902
  %v1275 = vmul.f32 %v907, %v907
  %v1276 = vmul.f32 %v912, %v912
  %v1277 = vmul.f32 %v917, %v917
  %v1278 = vmul.f32 %v922, %v922
  %v1279 = vmul.f32 %v927, %v927
  %v1280 = vmul.f32 %v932, %v932
  %v1281 = vmul.f32 %v937, %v937
  %v1282 = vmul.f32 %v942, %v942
  %v1283 = vadd.f32 %v1251, %v1267
  %v1284 = vadd.f32 %v1252, %v1268
  %v1285 = vadd.f32 %v1253, %v1269
  %v1286 = vadd.f32 %v1254, %v1270
  %v1287 = vadd.f32 %v1255, %v1271
  %v1288 = vadd.f32 %v1256, %v1272
  %v1289 = vadd.f32 %v1257, %v1273
  %v1290 = vadd.f32 %v1258, %v1274
  %v1291 = vadd.f32 %v1259, %v1275
  %v1292 = vadd.f32 %v1260, %v1276
  %v1293 = vadd.f32 %v1261, %v1277
  %v1294 = vadd.f32 %v1262, %v1278
  %v1295 = vadd.f32 %v1263, %v1279
  %v1296 = vadd.f32 %v1264, %v1280
  %v1297 = vadd.f32 %v1265, %v1281
  %v1298 = vadd.f32 %v1266, %v1282
  %v1300 = vsel %vm961, %v1283, 0
  %v1303 = vsel %vm961, %v1284, 0
  %v1306 = vsel %vm961, %v1285, 0
  %v1309 = vsel %vm961, %v1286, 0
  %v1312 = vsel %vm961, %v1287, 0
  %v1315 = vsel %vm961, %v1288, 0
  %v1318 = vsel %vm961, %v1289, 0
  %v1321 = vsel %vm961, %v1290, 0
  %v1324 = vsel %vm961, %v1291, 0
  %v1327 = vsel %vm961, %v1292, 0
  %v1330 = vsel %vm961, %v1293, 0
  %v1333 = vsel %vm961, %v1294, 0
  %v1336 = vsel %vm961, %v1295, 0
  %v1339 = vsel %vm961, %v1296, 0
  %v1342 = vsel %vm961, %v1297, 0
  %v1345 = vsel %vm961, %v1298, 0
  %1347 = vmatprep.subr.mxu0 0.0
  %1348 = vmatpush1.xpose.msra.mxu0 %v1300
  %1349 = vmatprep.subr.mxu0 0.0
  %1350 = vmatpush1.xpose.msra.mxu0 %v1303
  %1351 = vmatprep.subr.mxu0 0.0
  %1352 = vmatpush1.xpose.msra.mxu0 %v1306
  %1353 = vmatprep.subr.mxu0 0.0
  %1354 = vmatpush1.xpose.msra.mxu0 %v1309
  %1355 = vmatprep.subr.mxu0 0.0
  %1356 = vmatpush1.xpose.msra.mxu0 %v1312
  %1357 = vmatprep.subr.mxu0 0.0
  %1358 = vmatpush1.xpose.msra.mxu0 %v1315
  %1359 = vmatprep.subr.mxu0 0.0
  %1360 = vmatpush1.xpose.msra.mxu0 %v1318
  %1361 = vmatprep.subr.mxu0 0.0
  %1362 = vmatpush1.xpose.msra.mxu0 %v1321
  %1363 = vmatprep.subr.mxu0 0.0
  %1364 = vmatpush1.xpose.msra.mxu0 %v1324
  %1365 = vmatprep.subr.mxu0 0.0
  %1366 = vmatpush1.xpose.msra.mxu0 %v1327
  %1367 = vmatprep.subr.mxu0 0.0
  %1368 = vmatpush1.xpose.msra.mxu0 %v1330
  %1369 = vmatprep.subr.mxu0 0.0
  %1370 = vmatpush1.xpose.msra.mxu0 %v1333
  %1371 = vmatprep.subr.mxu0 0.0
  %1372 = vmatpush1.xpose.msra.mxu0 %v1336
  %1373 = vmatprep.subr.mxu0 0.0
  %1374 = vmatpush1.xpose.msra.mxu0 %v1339
  %1375 = vmatprep.subr.mxu0 0.0
  %1376 = vmatpush1.xpose.msra.mxu0 %v1342
  %1377 = vmatprep.subr.mxu0 0.0
  %1378 = vmatpush1.xpose.msra.mxu0 %v1345
  %1379 = vmatprep.subr.mxu0 0.0
  %1380 = vmatpush1.xpose.msra.mxu0 0.0
  %1381 = vmatprep.subr.mxu0 0.0
  %1382 = vmatpush1.xpose.msra.mxu0 0.0
  %1383 = vmatprep.subr.mxu0 0.0
  %1384 = vmatpush1.xpose.msra.mxu0 0.0
  %1385 = vmatprep.subr.mxu0 0.0
  %1386 = vmatpush1.xpose.msra.mxu0 0.0
  %1387 = vmatprep.subr.mxu0 0.0
  %1388 = vmatpush1.xpose.msra.mxu0 0.0
  %1389 = vmatprep.subr.mxu0 0.0
  %1390 = vmatpush1.xpose.msra.mxu0 0.0
  %1391 = vmatprep.subr.mxu0 0.0
  %1392 = vmatpush1.xpose.msra.mxu0 0.0
  %1393 = vmatprep.subr.mxu0 0.0
  %1394 = vmatpush1.xpose.msra.mxu0 0.0
  %1395 = vmatprep.subr.mxu0 0.0
  %1396 = vmatpush1.xpose.msra.mxu0 0.0
  %1397 = vmatprep.subr.mxu0 0.0
  %1398 = vmatpush1.xpose.msra.mxu0 0.0
  %1399 = vmatprep.subr.mxu0 0.0
  %1400 = vmatpush1.xpose.msra.mxu0 0.0
  %1401 = vmatprep.subr.mxu0 0.0
  %1402 = vmatpush1.xpose.msra.mxu0 0.0
  %1403 = vmatprep.subr.mxu0 0.0
  %1404 = vmatpush1.xpose.msra.mxu0 0.0
  %1405 = vmatprep.subr.mxu0 0.0
  %1406 = vmatpush1.xpose.msra.mxu0 0.0
  %1407 = vmatprep.subr.mxu0 0.0
  %1408 = vmatpush1.xpose.msra.mxu0 0.0
  %1409 = vmatprep.subr.mxu0 0.0
  %1410 = vmatpush1.xpose.msra.mxu0 0.0
  %1411 = vmatprep.mubr.f32.mxu0 0.0
  %1412 = vmatmul.mubr.f32.gmra.mrb[0].mxu0 %v963
  %v1413 = vpop.f32.mrb[0].mxu0
  %v1414 = vadd.f32 0.0, %v1413
  %v1415 = vpop.f32.mrb[0].mxu0
  %1416 = vdwg.mxu0
  %1417 = vst [vmem:[%s5 + $0x2] sm:$0x1] %v1414
  // Predicated region
  $region22: #{mf_forward.1} parent=0 // pred_check
    _
  $region23: #{mf_forward.1} parent=0 // pred_check_branch
    %1419 = sbr.rel (0) target = $region25
  $region24: #{mf_forward.1} parent=0 // pred_region
    _
  $region25: #{mf_forward.1} parent=0 // pred_fallthru
    _
  // Predicated region
  $region26: #{mf_forward.1} parent=0 // pred_check
    _
  $region27: #{mf_forward.1} parent=0 // pred_check_branch
    %1421 = sbr.rel (0) target = $region29
  $region28: #{mf_forward.1} parent=0 // pred_region
    _
  $region29: #{mf_forward.1} parent=0 // pred_fallthru
    _

</llo_original>
